<compile_context>
chip_gen: v7x
topology: tpu7x:2x2x1
jax: 0.10.0
libtpu: 0.0.40
codegen_flags: <defaults>
</compile_context>

<pallas_src>
import functools

import jax
import jax.numpy as jnp
from jax.experimental import pallas as pl
from jax.experimental.pallas import tpu as pltpu

ALPHA = 0.3
GAMMA = 1

_LOGITS_TILE_BYTES = 4 * 1024 * 1024  # per-tile logits budget (x2 pipeline buffers)


def _round_up(x, m):
    return ((x + m - 1) // m) * m


def _modulator(pt, gamma):
    """(1 - pt) ** gamma, resolved at trace time so integer gamma never hits EUP pow."""
    one_minus = 1.0 - pt
    if gamma == 0:
        return jnp.ones_like(pt)
    if isinstance(gamma, int) and gamma >= 1:
        out = one_minus
        for _ in range(int(gamma) - 1):
            out = out * one_minus
        return out
    return one_minus ** gamma


def _write_partial(out_ref, partial):
    """Write a per-tile scalar partial sum into an aligned, lane-dense (8,128) block."""
    r = jax.lax.broadcasted_iota(jnp.int32, (8, 128), 0)
    c = jax.lax.broadcasted_iota(jnp.int32, (8, 128), 1)
    out_ref[...] = jnp.where((r == 0) & (c == 0), partial, 0.0)


def _focal_kernel_cols(logits_ref, tgt_ref, out_ref, *, n_valid, alpha, gamma):
    """Batch-on-lanes layout (small C): logits tile (C, T), targets tile (1, T)."""
    x = logits_ref[...].astype(jnp.float32)          # (C, T)
    tgt = tgt_ref[...]                                # (1, T) int32
    c, t = x.shape

    # class reduction runs along sublanes; everything stays (1, T) lane-major
    m = jnp.max(x, axis=0, keepdims=True)                                   # (1, T)
    lse = m + jnp.log(jnp.sum(jnp.exp(x - m), axis=0, keepdims=True))       # (1, T)

    cls_ids = jax.lax.broadcasted_iota(jnp.int32, (c, t), 0)                # (C, T)
    onehot = (cls_ids == tgt).astype(jnp.float32)                           # (C, T)
    picked = jnp.sum(x * onehot, axis=0, keepdims=True)                     # (1, T)

    ce = lse - picked                                                       # (1, T)
    pt = jnp.exp(-ce)
    focal = alpha * _modulator(pt, gamma) * ce                              # (1, T)

    # mask padded batch lanes (n was padded up to a tile multiple)
    col_ids = pl.program_id(0) * t + jax.lax.broadcasted_iota(jnp.int32, (1, t), 1)
    focal = jnp.where(col_ids < n_valid, focal, 0.0)

    _write_partial(out_ref, jnp.sum(focal))


def _focal_kernel_rows(logits_ref, tgt_ref, out_ref, *, n_valid, alpha, gamma):
    """Class-on-lanes layout (C >= 128): logits tile (T, C), targets tile (T, 1)."""
    x = logits_ref[...].astype(jnp.float32)          # (T, C)
    tgt = tgt_ref[...]                                # (T, 1) int32
    t, c = x.shape

    m = jnp.max(x, axis=-1, keepdims=True)                                  # (T, 1)
    lse = m + jnp.log(jnp.sum(jnp.exp(x - m), axis=-1, keepdims=True))      # (T, 1)

    cls_ids = jax.lax.broadcasted_iota(jnp.int32, (t, c), 1)                # (T, C)
    onehot = (cls_ids == tgt).astype(jnp.float32)                           # (T, C)
    picked = jnp.sum(x * onehot, axis=-1, keepdims=True)                    # (T, 1)

    ce = lse - picked                                                       # (T, 1)
    pt = jnp.exp(-ce)
    focal = alpha * _modulator(pt, gamma) * ce                              # (T, 1)

    # mask padded batch rows
    row_ids = pl.program_id(0) * t + jax.lax.broadcasted_iota(jnp.int32, (t, 1), 0)
    focal = jnp.where(row_ids < n_valid, focal, 0.0)

    _write_partial(out_ref, jnp.sum(focal))


def focal_loss(logits, targets, *, alpha=ALPHA, gamma=GAMMA, reduction="sum"):
    """logits: (N, C), targets: (N,) int -> scalar focal loss (sum/mean)."""
    n, c = logits.shape
    targets = targets.astype(jnp.int32)
    itemsize = jnp.dtype(logits.dtype).itemsize

    if c < 128:
        # Batch-on-lanes: transpose in the wrapper so the 128-lane axis is fully used.
        tile_cap = max(128, (( _LOGITS_TILE_BYTES // (c * itemsize)) // 128) * 128)
        tile_n = max(128, min(4096, tile_cap, _round_up(n, 128)))
        num_tiles = (n + tile_n - 1) // tile_n
        n_pad = num_tiles * tile_n

        logits_in = jnp.pad(logits, ((0, n_pad - n), (0, 0))).T          # (C, N_pad)
        tgt_in = jnp.pad(targets, (0, n_pad - n)).reshape(1, n_pad)      # (1, N_pad)

        kernel = functools.partial(
            _focal_kernel_cols, n_valid=n, alpha=alpha, gamma=gamma)
        in_specs = [
            pl.BlockSpec((c, tile_n), lambda i: (0, i)),
            pl.BlockSpec((1, tile_n), lambda i: (0, i)),
        ]
    else:
        tile_cap = max(8, ((_LOGITS_TILE_BYTES // (c * itemsize)) // 8) * 8)
        tile_n = max(8, min(2048, tile_cap, _round_up(n, 8)))
        num_tiles = (n + tile_n - 1) // tile_n
        n_pad = num_tiles * tile_n

        logits_in = jnp.pad(logits, ((0, n_pad - n), (0, 0)))            # (N_pad, C)
        tgt_in = jnp.pad(targets, (0, n_pad - n)).reshape(n_pad, 1)      # (N_pad, 1)

        kernel = functools.partial(
            _focal_kernel_rows, n_valid=n, alpha=alpha, gamma=gamma)
        in_specs = [
            pl.BlockSpec((tile_n, c), lambda i: (i, 0)),
            pl.BlockSpec((tile_n, 1), lambda i: (i, 0)),
        ]

    partials = pl.pallas_call(
        kernel,
        out_shape=jax.ShapeDtypeStruct((num_tiles * 8, 128), jnp.float32),
        grid=(num_tiles,),
        in_specs=in_specs,
        out_specs=pl.BlockSpec((8, 128), lambda i: (i, 0)),
        compiler_params=pltpu.CompilerParams(
            dimension_semantics=("parallel",),
        ),
    )(logits_in, tgt_in)

    total = jnp.sum(partials)  # tiny second-stage sum over per-tile partials
    if reduction == "sum":
        return total
    if reduction == "mean":
        return total / n
    raise NotImplementedError(f"reduction={reduction!r} not supported")


def _reference(logits, targets, alpha=ALPHA, gamma=GAMMA):
    logp = jax.nn.log_softmax(logits.astype(jnp.float32), axis=-1)
    ce = -jnp.take_along_axis(logp, targets[:, None], axis=-1)[:, 0]
    pt = jnp.exp(-ce)
    return jnp.sum(alpha * (1.0 - pt) ** gamma * ce)


if __name__ == "__main__":
    key = jax.random.PRNGKey(0)
    k_logits, k_tgt = jax.random.split(key)

    # small-C case (batch-on-lanes path), matching the module's typical use
    N, C = 8, 16
    logits = jax.random.normal(k_logits, (N, C), dtype=jnp.float32)
    targets = jax.random.randint(k_tgt, (N,), 0, C, dtype=jnp.int32)

    loss = focal_loss(logits, targets)
    jax.block_until_ready(loss)
    ref = _reference(logits, targets)
    assert jnp.allclose(loss, ref, rtol=1e-5, atol=1e-5), (loss, ref)

    # larger case exercising the row-tiled (C >= 128) path, multiple grid tiles and
    # padded-row masking
    k1, k2 = jax.random.split(k_tgt)
    N2, C2 = 2500, 1024
    logits2 = jax.random.normal(k1, (N2, C2), dtype=jnp.float32)
    targets2 = jax.random.randint(k2, (N2,), 0, C2, dtype=jnp.int32)

    loss2 = focal_loss(logits2, targets2)
    jax.block_until_ready(loss2)
    ref2 = _reference(logits2, targets2)
    assert jnp.allclose(loss2, ref2, rtol=1e-4, atol=1e-4), (loss2, ref2)

    print("KERNEL_OK")
</pallas_src>

<mosaic_0001>
module attributes {stable_mosaic.version = 11 : i64} {
  func.func @_focal_kernel_cols(%arg0: i32, %arg1: memref<16x128xf32, #tpu.memory_space<vmem>>, %arg2: memref<1x128xi32, #tpu.memory_space<vmem>>, %arg3: memref<8x128xf32, #tpu.memory_space<vmem>>) attributes {dimension_semantics = [#tpu.dimension_semantics<parallel>], iteration_bounds = array<i64: 1>, scalar_prefetch = 0 : i64, scratch_operands = 0 : i64, tpu.core_type = #tpu.core_type<tc>, window_params = [{transform_indices = @transform_0, window_bounds = array<i64: 16, 128>}, {transform_indices = @transform_1, window_bounds = array<i64: 1, 128>}, {transform_indices = @transform_2, window_bounds = array<i64: 8, 128>}]} {
    %c0 = arith.constant 0 : index
    %c0_0 = arith.constant 0 : index
    %0 = vector.load %arg1[%c0, %c0_0] : memref<16x128xf32, #tpu.memory_space<vmem>>, vector<16x128xf32>
    %c0_1 = arith.constant 0 : index
    %c0_2 = arith.constant 0 : index
    %1 = vector.load %arg2[%c0_1, %c0_2] : memref<1x128xi32, #tpu.memory_space<vmem>>, vector<1x128xi32>
    %cst = arith.constant dense<0xFF800000> : vector<128xf32>
    %2 = vector.multi_reduction <maximumf>, %0, %cst [0] : vector<16x128xf32> to vector<128xf32>
    %3 = vector.shape_cast %2 : vector<128xf32> to vector<1x128xf32>
    %4 = vector.broadcast %3 : vector<1x128xf32> to vector<16x128xf32>
    %5 = arith.subf %0, %4 : vector<16x128xf32>
    %6 = math.exp %5 : vector<16x128xf32>
    %cst_3 = arith.constant dense<0.000000e+00> : vector<128xf32>
    %7 = vector.multi_reduction <add>, %6, %cst_3 [0] : vector<16x128xf32> to vector<128xf32>
    %8 = vector.shape_cast %7 : vector<128xf32> to vector<1x128xf32>
    %9 = math.log %8 : vector<1x128xf32>
    %10 = arith.addf %3, %9 : vector<1x128xf32>
    %11 = tpu.iota {dimensions = array<i32: 0>} : vector<16x128xi32>
    %12 = vector.broadcast %1 : vector<1x128xi32> to vector<16x128xi32>
    %13 = arith.cmpi eq, %11, %12 : vector<16x128xi32>
    %14 = arith.extui %13 : vector<16x128xi1> to vector<16x128xi32>
    %15 = arith.sitofp %14 : vector<16x128xi32> to vector<16x128xf32>
    %16 = arith.mulf %0, %15 : vector<16x128xf32>
    %cst_4 = arith.constant dense<0.000000e+00> : vector<128xf32>
    %17 = vector.multi_reduction <add>, %16, %cst_4 [0] : vector<16x128xf32> to vector<128xf32>
    %18 = vector.shape_cast %17 : vector<128xf32> to vector<1x128xf32>
    %19 = arith.subf %10, %18 : vector<1x128xf32>
    %cst_5 = arith.constant 0.000000e+00 : f32
    %20 = vector.broadcast %cst_5 : f32 to vector<1x128xf32>
    %21 = arith.subf %20, %19 : vector<1x128xf32>
    %22 = math.exp %21 : vector<1x128xf32>
    %cst_6 = arith.constant 1.000000e+00 : f32
    %23 = vector.broadcast %cst_6 : f32 to vector<1x128xf32>
    %24 = arith.subf %23, %22 : vector<1x128xf32>
    %cst_7 = arith.constant 3.000000e-01 : f32
    %25 = vector.broadcast %cst_7 : f32 to vector<1x128xf32>
    %26 = arith.mulf %25, %24 : vector<1x128xf32>
    %27 = arith.mulf %26, %19 : vector<1x128xf32>
    %c128_i32 = arith.constant 128 : i32
    %28 = arith.muli %arg0, %c128_i32 : i32
    %29 = tpu.iota {dimensions = array<i32: 1>} : vector<1x128xi32>
    %30 = vector.broadcast %28 : i32 to vector<1x128xi32>
    %31 = arith.addi %30, %29 : vector<1x128xi32>
    %c8_i32 = arith.constant 8 : i32
    %32 = vector.broadcast %c8_i32 : i32 to vector<1x128xi32>
    %33 = arith.cmpi slt, %31, %32 : vector<1x128xi32>
    %cst_8 = arith.constant 0.000000e+00 : f32
    %34 = vector.broadcast %cst_8 : f32 to vector<1x128xf32>
    %35 = arith.select %33, %27, %34 : vector<1x128xi1>, vector<1x128xf32>
    %36 = vector.shape_cast %35 : vector<1x128xf32> to vector<1x1x128xf32>
    %cst_9 = arith.constant dense<0.000000e+00> : vector<1xf32>
    %37 = vector.multi_reduction <add>, %36, %cst_9 [1, 2] : vector<1x1x128xf32> to vector<1xf32>
    %38 = vector.shape_cast %37 : vector<1xf32> to vector<1x1x1xf32>
    %39 = vector.extract %38[0, 0, 0] : f32 from vector<1x1x1xf32>
    %40 = tpu.iota {dimensions = array<i32: 0>} : vector<8x128xi32>
    %41 = tpu.iota {dimensions = array<i32: 1>} : vector<8x128xi32>
    %c0_i32 = arith.constant 0 : i32
    %42 = vector.broadcast %c0_i32 : i32 to vector<8x128xi32>
    %43 = arith.cmpi eq, %40, %42 : vector<8x128xi32>
    %c0_i32_10 = arith.constant 0 : i32
    %44 = vector.broadcast %c0_i32_10 : i32 to vector<8x128xi32>
    %45 = arith.cmpi eq, %41, %44 : vector<8x128xi32>
    %46 = arith.andi %43, %45 : vector<8x128xi1>
    %cst_11 = arith.constant 0.000000e+00 : f32
    %47 = vector.broadcast %39 : f32 to vector<8x128xf32>
    %48 = vector.broadcast %cst_11 : f32 to vector<8x128xf32>
    %49 = arith.select %46, %47, %48 : vector<8x128xi1>, vector<8x128xf32>
    %c0_12 = arith.constant 0 : index
    %c0_13 = arith.constant 0 : index
    %50 = vector.load %arg3[%c0_12, %c0_13] : memref<8x128xf32, #tpu.memory_space<vmem>>, vector<8x128xf32>
    tpu.vector_store %arg3[%c0_12, %c0_13], %49 {strides = array<i32>} : memref<8x128xf32, #tpu.memory_space<vmem>>, vector<8x128xf32>,
    return
  }
  func.func @transform_0(%arg0: i32) -> (i32, i32) {
    %c0_i32 = arith.constant 0 : i32
    %c0_i32_0 = arith.constant 0 : i32
    return %c0_i32, %arg0 : i32, i32
  }
  func.func @transform_1(%arg0: i32) -> (i32, i32) {
    %c0_i32 = arith.constant 0 : i32
    %c0_i32_0 = arith.constant 0 : i32
    return %c0_i32, %arg0 : i32, i32
  }
  func.func @transform_2(%arg0: i32) -> (i32, i32) {
    %c0_i32 = arith.constant 0 : i32
    %c0_i32_0 = arith.constant 0 : i32
    return %arg0, %c0_i32 : i32, i32
  }
}

</mosaic_0001>

<llo_original>
// kernel: tpu_custom_call.1
$region0: #{tpu_custom_call.1}
  #allocation0 [shape = 'u32[]', space=smem, size = 0x4, offset = 0x4, fixed_abs, tag = 'smem constant byte address 0x4 - core index']
  #allocation1 [shape = 'u32[144,128]{1,0:T(1,128)}', space=vmem, size = 0x12000, scoped, tag = 'internal scratch']
  %s0 = inlined_call_operand.hbm [shape: f32[16,128], index: 0, kind: input, shape index: {}]
  %s1 = inlined_call_operand.vmem [shape: s32[1,128], index: 1, kind: input, shape index: {}]
  %s2 = inlined_call_operand.hbm [shape: f32[8,128], index: 2, kind: output, shape index: {}]
  %s3 = sld [smem:[#allocation0]]
  $region22: #{tpu_custom_call.1} parent=0
    _
  %s5 = ssub.s32 1, %s3
  %s6 = scalar_select 0, %s5, %s3
  $region1: #{tpu_custom_call.1} parent=0
    #allocation2 [shape = 'u8[8192]{0}', space=vmem, size = 0x2000, scoped, tag = 'input window, operand 0, single buffered']
    #allocation3 [shape = 's32[1]{0}', space=sflag, size = 0x4, scoped, tag = 'scoped memory for tpu_custom_call.1']
    #allocation4 [shape = 's32[1]{0}', space=sflag, size = 0x4, scoped, tag = 'scoped memory for tpu_custom_call.1']
    #allocation5 [shape = 'u8[4096]{0}', space=vmem, size = 0x1000, scoped, tag = 'output window, operand 0, single buffered']
    %7 = vsyncpa [#allocation3], 0
    %8 = vsyncpa [#allocation4], 0
    // Predicated region
    $region2: #{tpu_custom_call.1} parent=1 // pred_check
      _
    $region3: #{tpu_custom_call.1} parent=1 // pred_check_branch
      %10 = sbr.rel (0) target = $region5
    $region4: #{tpu_custom_call.1} parent=1 // pred_region
      %s12 = ssub.s32 256, 256
      %13 = vsyncadd [#allocation3], %s12
      %s14 = sshll.u32 [#allocation2], 4
      %s15 = int_to_ptr.vmem [resolvable:$true] %s14
      %20 = dma.hbm_to_vmem [thread:$0]  %s0, 256, %s15, [#allocation3], 128, 128, 8
    $region5: #{tpu_custom_call.1} parent=1 // pred_fallthru
      _
    // Predicated region
    $region6: #{tpu_custom_call.1} parent=1 // pred_check
      _
    $region7: #{tpu_custom_call.1} parent=1 // pred_check_branch
      %22 = sbr.rel (0) target = $region9
    $region8: #{tpu_custom_call.1} parent=1 // pred_region
      _
    $region9: #{tpu_custom_call.1} parent=1 // pred_fallthru
      _
    // Predicated region
    $region10: #{tpu_custom_call.1} parent=1 // pred_check
      _
    $region11: #{tpu_custom_call.1} parent=1 // pred_check_branch
      %24 = sbr.rel (0) target = $region13
    $region12: #{tpu_custom_call.1} parent=1 // pred_region
      %25 = dma.done [#allocation3], 256
    $region13: #{tpu_custom_call.1} parent=1 // pred_fallthru
      _
    %v26 = vld [vmem:[#allocation2] sm:$0xff]
    %v27 = vld [vmem:[#allocation2 + $0x8] sm:$0xff]
    %v28 = vld [vmem:[%s1] sm:$0x1]
    %v29 = vmax.f32 %v26, %v27
    %v30 = vrot.slane %v29, 4
    %v31 = vmax.f32 %v29, %v30
    %v32 = vrot.slane %v31, 2
    %v33 = vmax.f32 %v31, %v32
    %v34 = vrot.slane %v33, 1
    %v35 = vmax.f32 %v33, %v34
    %v36 = vsub.f32 %v26, %v35
    %v37 = vsub.f32 %v27, %v35
    %v38 = vmul.f32 %v36, 1.442695
    %v39 = vpow.pop %v38
    %v40 = vmul.f32 %v37, 1.442695
    %v41 = vpow.pop %v40
    %v42 = vadd.f32 %v39, %v41
    %v43 = vrot.slane %v42, 4
    %v44 = vadd.f32 %v42, %v43
    %v45 = vrot.slane %v44, 2
    %v46 = vadd.f32 %v44, %v45
    %v47 = vrot.slane %v46, 1
    %v48 = vadd.f32 %v46, %v47
    %v49 = vlog2.pop %v48
    %v50 = vmul.f32 %v49, 0.6931472
    %v51 = vadd.f32 %v35, %v50
    %v52 = vlaneseq
    %v53 = vshrl.u32 %v52, 7
    %v54 = vadd.s32 %v53, 8
    %v55 = vlaneseq
    %v56 = vshrl.u32 %v55, 7
    %v57 = vsub.s32 0, %v56
    %v58 = vrot.slane %v28, %v57
    %vm59 = vcmp.eq.s32.totalorder %v53, %v58
    %vm60 = vcmp.eq.s32.totalorder %v54, %v58
    %v61 = vsel %vm59, 1, 0
    %v62 = vsel %vm60, 1, 0
    %v63 = vcvt.s32.f32 %v61
    %v64 = vcvt.s32.f32 %v62
    %v65 = vmul.f32 %v26, %v63
    %v66 = vmul.f32 %v27, %v64
    %v67 = vadd.f32 %v65, %v66
    %v68 = vrot.slane %v67, 4
    %v69 = vadd.f32 %v67, %v68
    %v70 = vrot.slane %v69, 2
    %v71 = vadd.f32 %v69, %v70
    %v72 = vrot.slane %v71, 1
    %v73 = vadd.f32 %v71, %v72
    %v74 = vsub.f32 %v51, %v73
    %v75 = vsub.f32 0.0, %v74
    %v76 = vmul.f32 %v75, 1.442695
    %v77 = vpow.pop %v76
    %v78 = vsub.f32 1.0, %v77
    %v79 = vmul.f32 %v78, 0.3
    %v80 = vmul.f32 %v79, %v74
    %s81 = smul.u32 0, 128
    %v82 = vlaneseq
    %v83 = vand.u32 %v82, 127
    %v84 = vstv %s81
    %v85 = vadd.s32 %v84, %v83
    %vm86 = vcmp.lt.s32.totalorder %v85, 8
    %v87 = vsel %vm86, %v80, 0.0
    %vm88 = vcmask 1040384
    %v89 = vsel %vm88, %v87, 0.0
    %90 = vadd.xlane.f32.xlu0 %v89
    %v91 = vpop.xlane.xlu0 %90
    %v92 = vrot.slane %v91, 4
    %v93 = vadd.f32 %v91, %v92
    %v94 = vrot.slane %v93, 2
    %v95 = vadd.f32 %v93, %v94
    %v96 = vrot.slane %v95, 1
    %v97 = vadd.f32 %v95, %v96
    %s98 = vtos %v97
    %vm99 = vcmp.eq.s32.totalorder %v53, 0
    %vm100 = vcmp.eq.s32.totalorder %v83, 0
    %vm101 = vmand %vm99, %vm100
    %v102 = vstv %s98
    %v103 = vsel %vm101, %v102, 0.0
    %104 = vst [vmem:[#allocation5] sm:$0xff] %v103
    // Predicated region
    $region14: #{tpu_custom_call.1} parent=1 // pred_check
      _
    $region15: #{tpu_custom_call.1} parent=1 // pred_check_branch
      %106 = sbr.rel (0) target = $region17
    $region16: #{tpu_custom_call.1} parent=1 // pred_region
      %s108 = ssub.s32 128, 128
      %109 = vsyncadd [#allocation4], %s108
      %s111 = sshll.u32 [#allocation5], 4
      %s112 = int_to_ptr.vmem [resolvable:$true] %s111
      %114 = dma.vmem_to_hbm [thread:$0]  %s112, 128, %s2, [#allocation4]
    $region17: #{tpu_custom_call.1} parent=1 // pred_fallthru
      _
    // Predicated region
    $region18: #{tpu_custom_call.1} parent=1 // pred_check
      _
    $region19: #{tpu_custom_call.1} parent=1 // pred_check_branch
      %116 = sbr.rel (0) target = $region21
    $region20: #{tpu_custom_call.1} parent=1 // pred_region
      %117 = dma.done [#allocation4], 128
    $region21: #{tpu_custom_call.1} parent=1 // pred_fallthru
      _
    %118 = vsyncpa [#allocation3], 1
    %119 = vsyncpa [#allocation4], 1

</llo_original>
